<compile_context>
chip_gen: v5e
topology: v5e:2x2
jax: 0.10.0
libtpu: 0.0.40
codegen_flags: <defaults>
</compile_context>

<pallas_src>
import functools

import jax
import jax.numpy as jnp
from jax.experimental import pallas as pl
from jax.experimental.pallas import tpu as pltpu


def _layer_norm_kernel(x_ref, a_ref, b_ref, o_ref, *, eps, d):
    # x_ref: [TR, D]   a_ref/b_ref: [1, D]   o_ref: [TR, D]
    x = x_ref[...].astype(jnp.float32)

    mean = jnp.sum(x, axis=-1, keepdims=True) * (1.0 / d)            # [TR, 1]
    xc = x - mean                                                    # [TR, D]

    # torch.Tensor.std defaults to the unbiased estimator (ddof = 1).
    var = jnp.sum(xc * xc, axis=-1, keepdims=True) * (1.0 / (d - 1.0))

    # Per-row scale: EUP approximate-reciprocal seed + one Newton step.
    denom = jnp.sqrt(var) + eps                                      # [TR, 1]
    inv = pl.reciprocal(denom, approx=True)
    inv = inv * (2.0 - denom * inv)                                  # refine to ~f32

    o_ref[...] = (a_ref[...] * (xc * inv) + b_ref[...]).astype(o_ref.dtype)


def _pick_block_rows(n_rows, d, itemsize):
    """D-aware, sublane-aligned, VMEM-budgeted row-block size."""
    sub = max(8, 32 // itemsize)              # f32 -> 8, bf16 -> 16, int8 -> 32
    row_bytes = d * itemsize
    target_block_bytes = 4 << 20              # ~4 MiB per block per array
    vmem_work_budget = 48 << 20               # dbl-buffered in+out cap (v7x: 64 MiB/TC)

    tr = max(target_block_bytes // row_bytes, 1)
    tr = min(tr, max(vmem_work_budget // (4 * row_bytes), 1))
    tr = max(sub, (tr // sub) * sub)

    if n_rows <= tr:
        if n_rows >= 4 * sub:
            # Force >= 2 row blocks so both v7x TensorCores get work.
            half = pl.cdiv(n_rows, 2)
            tr = ((half + sub - 1) // sub) * sub
        else:
            tr = n_rows                       # single full-extent block (layout-legal)
    return tr


def layer_norm(x, a_2, b_2, *, eps=1e-6):
    """x: [..., D].  a_2, b_2: [D].  Returns LayerNorm(x) with torch semantics."""
    orig_shape = x.shape
    D = orig_shape[-1]
    assert D > 1, "unbiased std (ddof=1) requires D > 1"

    x2 = x.reshape(-1, D)
    N = x2.shape[0]
    itemsize = jnp.dtype(x2.dtype).itemsize

    tr = _pick_block_rows(N, D, itemsize)
    grid = (pl.cdiv(N, tr),)                  # ragged tail clipped by Pallas

    a2 = a_2.reshape(1, D).astype(jnp.float32)
    b2 = b_2.reshape(1, D).astype(jnp.float32)

    kernel = functools.partial(_layer_norm_kernel, eps=float(eps), d=float(D))

    row_spec = pl.BlockSpec((tr, D), lambda i: (i, 0))
    par_spec = pl.BlockSpec((1, D), lambda i: (0, 0))    # constant across grid steps

    # Explicit VMEM budget: double-buffered in + out blocks, gamma/beta, slack.
    work_bytes = 4 * tr * D * itemsize + 4 * D * 4 + (2 << 20)
    vmem_limit = int(min(max(work_bytes, 32 << 20), 56 << 20))

    cost = pl.CostEstimate(
        flops=int(8 * N * D),
        transcendentals=int(2 * N),                       # sqrt + rcp per row
        bytes_accessed=int(2 * N * D * itemsize + 2 * D * 4),
    )

    out = pl.pallas_call(
        kernel,
        out_shape=jax.ShapeDtypeStruct((N, D), x.dtype),
        grid=grid,
        in_specs=[row_spec, par_spec, par_spec],
        out_specs=row_spec,
        compiler_params=pltpu.CompilerParams(
            dimension_semantics=("parallel",),
            vmem_limit_bytes=vmem_limit,
        ),
        cost_estimate=cost,
    )(x2, a2, b2)

    return out.reshape(orig_shape)


def _reference(x, a_2, b_2, eps=1e-6):
    """Pure-JAX reference mirroring the PyTorch forward (unbiased std)."""
    mean = jnp.mean(x, axis=-1, keepdims=True)
    std = jnp.std(x, axis=-1, keepdims=True, ddof=1)
    return a_2 * (x - mean) / (std + eps) + b_2


if __name__ == "__main__":
    B, S, D = 2, 8, 32   # batch, seq, features

    root = jax.random.PRNGKey(0)
    k_x, k_a, k_b = jax.random.split(root, 3)
    x = jax.random.normal(k_x, (B, S, D), jnp.float32)
    # Non-trivial affine params to exercise the gamma/beta path.
    a_2 = 1.0 + 0.1 * jax.random.normal(k_a, (D,), jnp.float32)
    b_2 = 0.1 * jax.random.normal(k_b, (D,), jnp.float32)

    out = layer_norm(x, a_2, b_2, eps=1e-6)
    out = jax.block_until_ready(out)

    ref = _reference(x, a_2, b_2, eps=1e-6)
    assert out.shape == (B, S, D)
    assert jnp.allclose(out, ref, rtol=5e-4, atol=1e-5), "Pallas output mismatch vs reference"

    print("KERNEL_OK")
</pallas_src>

<mosaic_0001>
module attributes {stable_mosaic.version = 11 : i64} {
  func.func @_layer_norm_kernel(%arg0: i32, %arg1: memref<16x32xf32, #tpu.memory_space<vmem>>, %arg2: memref<1x32xf32, #tpu.memory_space<vmem>>, %arg3: memref<1x32xf32, #tpu.memory_space<vmem>>, %arg4: memref<16x32xf32, #tpu.memory_space<vmem>>) attributes {dimension_semantics = [#tpu.dimension_semantics<parallel>], iteration_bounds = array<i64: 1>, scalar_prefetch = 0 : i64, scratch_operands = 0 : i64, tpu.core_type = #tpu.core_type<tc>, window_params = [{transform_indices = @transform_0, window_bounds = array<i64: 16, 32>}, {pipeline_mode = #tpu.pipeline_mode<synchronous>, transform_indices = @transform_1, window_bounds = array<i64: 1, 32>}, {pipeline_mode = #tpu.pipeline_mode<synchronous>, transform_indices = @transform_2, window_bounds = array<i64: 1, 32>}, {transform_indices = @transform_3, window_bounds = array<i64: 16, 32>}]} {
    %c0 = arith.constant 0 : index
    %c0_0 = arith.constant 0 : index
    %0 = vector.load %arg1[%c0, %c0_0] : memref<16x32xf32, #tpu.memory_space<vmem>>, vector<16x32xf32>
    %cst = arith.constant dense<0.000000e+00> : vector<16xf32>
    %1 = vector.multi_reduction <add>, %0, %cst [1] : vector<16x32xf32> to vector<16xf32>
    %2 = vector.shape_cast %1 : vector<16xf32> to vector<16x1xf32>
    %cst_1 = arith.constant 3.125000e-02 : f32
    %3 = vector.broadcast %cst_1 : f32 to vector<16x1xf32>
    %4 = arith.mulf %2, %3 : vector<16x1xf32>
    %5 = vector.broadcast %4 : vector<16x1xf32> to vector<16x32xf32>
    %6 = arith.subf %0, %5 : vector<16x32xf32>
    %7 = arith.mulf %6, %6 : vector<16x32xf32>
    %cst_2 = arith.constant dense<0.000000e+00> : vector<16xf32>
    %8 = vector.multi_reduction <add>, %7, %cst_2 [1] : vector<16x32xf32> to vector<16xf32>
    %9 = vector.shape_cast %8 : vector<16xf32> to vector<16x1xf32>
    %cst_3 = arith.constant 0.0322580636 : f32
    %10 = vector.broadcast %cst_3 : f32 to vector<16x1xf32>
    %11 = arith.mulf %9, %10 : vector<16x1xf32>
    %12 = math.sqrt %11 : vector<16x1xf32>
    %cst_4 = arith.constant 9.99999997E-7 : f32
    %13 = vector.broadcast %cst_4 : f32 to vector<16x1xf32>
    %14 = arith.addf %12, %13 : vector<16x1xf32>
    %15 = tpu.reciprocal %14 {approx = true} : vector<16x1xf32> -> vector<16x1xf32>
    %16 = arith.mulf %14, %15 : vector<16x1xf32>
    %cst_5 = arith.constant 2.000000e+00 : f32
    %17 = vector.broadcast %cst_5 : f32 to vector<16x1xf32>
    %18 = arith.subf %17, %16 : vector<16x1xf32>
    %19 = arith.mulf %15, %18 : vector<16x1xf32>
    %c0_6 = arith.constant 0 : index
    %c0_7 = arith.constant 0 : index
    %20 = vector.load %arg2[%c0_6, %c0_7] : memref<1x32xf32, #tpu.memory_space<vmem>>, vector<1x32xf32>
    %21 = vector.broadcast %19 : vector<16x1xf32> to vector<16x32xf32>
    %22 = arith.mulf %6, %21 : vector<16x32xf32>
    %23 = vector.broadcast %20 : vector<1x32xf32> to vector<16x32xf32>
    %24 = arith.mulf %23, %22 : vector<16x32xf32>
    %c0_8 = arith.constant 0 : index
    %c0_9 = arith.constant 0 : index
    %25 = vector.load %arg3[%c0_8, %c0_9] : memref<1x32xf32, #tpu.memory_space<vmem>>, vector<1x32xf32>
    %26 = vector.broadcast %25 : vector<1x32xf32> to vector<16x32xf32>
    %27 = arith.addf %24, %26 : vector<16x32xf32>
    %c0_10 = arith.constant 0 : index
    %c0_11 = arith.constant 0 : index
    %28 = vector.load %arg4[%c0_10, %c0_11] : memref<16x32xf32, #tpu.memory_space<vmem>>, vector<16x32xf32>
    tpu.vector_store %arg4[%c0_10, %c0_11], %27 {strides = array<i32>} : memref<16x32xf32, #tpu.memory_space<vmem>>, vector<16x32xf32>,
    return
  }
  func.func @transform_0(%arg0: i32) -> (i32, i32) {
    %c0_i32 = arith.constant 0 : i32
    %c0_i32_0 = arith.constant 0 : i32
    return %arg0, %c0_i32 : i32, i32
  }
  func.func @transform_1(%arg0: i32) -> (i32, i32) {
    %c0_i32 = arith.constant 0 : i32
    %c0_i32_0 = arith.constant 0 : i32
    %c0_i32_1 = arith.constant 0 : i32
    return %c0_i32, %c0_i32_0 : i32, i32
  }
  func.func @transform_2(%arg0: i32) -> (i32, i32) {
    %c0_i32 = arith.constant 0 : i32
    %c0_i32_0 = arith.constant 0 : i32
    %c0_i32_1 = arith.constant 0 : i32
    return %c0_i32, %c0_i32_0 : i32, i32
  }
  func.func @transform_3(%arg0: i32) -> (i32, i32) {
    %c0_i32 = arith.constant 0 : i32
    %c0_i32_0 = arith.constant 0 : i32
    return %arg0, %c0_i32 : i32, i32
  }
}

</mosaic_0001>

<llo_original>
// kernel: tpu_custom_call.1
$region0: #{tpu_custom_call.1}
  #allocation0 [shape = 'u32[]', space=smem, size = 0x4, offset = 0x4, fixed_abs, tag = 'smem constant byte address 0x4 - core index']
  #allocation1 [shape = 'u32[72,128]{1,0:T(1,128)}', space=vmem, size = 0x9000, scoped, tag = 'internal scratch']
  %s0 = inlined_call_operand.hbm [shape: f32[16,32], index: 0, kind: input, shape index: {}]
  %s1 = inlined_call_operand.hbm [shape: f32[1,32], index: 1, kind: input, shape index: {}]
  %s2 = inlined_call_operand.vmem [shape: f32[1,32], index: 2, kind: input, shape index: {}]
  %s3 = inlined_call_operand.hbm [shape: f32[16,32], index: 3, kind: output, shape index: {}]
  %s4 = sld [smem:[#allocation0]]
  $region30: #{tpu_custom_call.1} parent=0
    _
  %s6 = ssub.s32 1, %s4
  %s7 = scalar_select 0, %s6, %s4
  $region1: #{tpu_custom_call.1} parent=0
    #allocation2 [shape = 'u8[8192]{0}', space=vmem, size = 0x2000, scoped, tag = 'input window, operand 0, single buffered']
    #allocation3 [shape = 's32[1]{0}', space=sflag, size = 0x4, scoped, tag = 'scoped memory for tpu_custom_call.1']
    #allocation4 [shape = 's32[1]{0}', space=sflag, size = 0x4, scoped, tag = 'scoped memory for tpu_custom_call.1']
    #allocation5 [shape = 'u8[512]{0}', space=vmem, size = 0x400, scoped, tag = 'input window, operand 1, single buffered']
    #allocation6 [shape = 's32[1]{0}', space=sflag, size = 0x4, scoped, tag = 'scoped memory for tpu_custom_call.1']
    #allocation7 [shape = 'u8[8192]{0}', space=vmem, size = 0x2000, scoped, tag = 'output window, operand 0, single buffered']
    %8 = vsyncpa [#allocation3], 0
    %9 = vsyncpa [#allocation6], 0
    %10 = vsyncpa [#allocation4], 0
    // Predicated region
    $region2: #{tpu_custom_call.1} parent=1 // pred_check
      _
    $region3: #{tpu_custom_call.1} parent=1 // pred_check_branch
      %12 = sbr.rel (0) target = $region5
    $region4: #{tpu_custom_call.1} parent=1 // pred_region
      %14 = vsyncadd [#allocation3], 0
      %s15 = sshll.u32 %s0, 4
      %s16 = int_to_ptr.hbm [resolvable:$true] %s15
      %s17 = sshll.u32 [#allocation2], 4
      %s18 = int_to_ptr.vmem [resolvable:$true] %s17
      %23 = dma.hbm_to_vmem [thread:$0]  %s16, 256, %s18, [#allocation3], 128, 128, 8
    $region5: #{tpu_custom_call.1} parent=1 // pred_fallthru
      _
    // Predicated region
    $region6: #{tpu_custom_call.1} parent=1 // pred_check
      _
    $region7: #{tpu_custom_call.1} parent=1 // pred_check_branch
      %25 = sbr.rel (0) target = $region9
    $region8: #{tpu_custom_call.1} parent=1 // pred_region
      %27 = vsyncadd [#allocation6], 0
      %s29 = sshll.u32 %s1, 4
      %s30 = int_to_ptr.hbm [resolvable:$true] %s29
      %s31 = sshll.u32 [#allocation5], 4
      %s32 = int_to_ptr.vmem [resolvable:$true] %s31
      %34 = dma.hbm_to_vmem [thread:$0]  %s30, 16, %s32, [#allocation6]
    $region9: #{tpu_custom_call.1} parent=1 // pred_fallthru
      _
    // Predicated region
    $region10: #{tpu_custom_call.1} parent=1 // pred_check
      _
    $region11: #{tpu_custom_call.1} parent=1 // pred_check_branch
      %36 = sbr.rel (0) target = $region13
    $region12: #{tpu_custom_call.1} parent=1 // pred_region
      _
    $region13: #{tpu_custom_call.1} parent=1 // pred_fallthru
      _
    // Predicated region
    $region14: #{tpu_custom_call.1} parent=1 // pred_check
      _
    $region15: #{tpu_custom_call.1} parent=1 // pred_check_branch
      %38 = sbr.rel (0) target = $region17
    $region16: #{tpu_custom_call.1} parent=1 // pred_region
      %40 = dma.done [#allocation3], 256
    $region17: #{tpu_custom_call.1} parent=1 // pred_fallthru
      _
    // Predicated region
    $region18: #{tpu_custom_call.1} parent=1 // pred_check
      _
    $region19: #{tpu_custom_call.1} parent=1 // pred_check_branch
      %42 = sbr.rel (0) target = $region21
    $region20: #{tpu_custom_call.1} parent=1 // pred_region
      %44 = dma.done [#allocation6], 16
    $region21: #{tpu_custom_call.1} parent=1 // pred_fallthru
      _
    %v45 = vld [vmem:[#allocation2] sm:$0xff]
    %v46 = vld [vmem:[#allocation2 + $0x8] sm:$0xff]
    %vm47 = vcmask 261120
    %v48 = vsel %vm47, %v45, 0.0
    %49 = vadd.xlane.f32.xlu0 %v48
    %v50 = vpop.xlane.xlu0 %49
    %v51 = vsel %vm47, %v46, 0.0
    %52 = vadd.xlane.f32.xlu0 %v51
    %v53 = vpop.xlane.xlu0 %52
    %v54 = vmul.f32 %v50, 0.03125
    %v55 = vmul.f32 %v53, 0.03125
    %v56 = vsub.f32 %v45, %v54
    %v57 = vsub.f32 %v46, %v55
    %v58 = vmul.f32 %v56, %v56
    %v59 = vmul.f32 %v57, %v57
    %v60 = vsel %vm47, %v58, 0.0
    %61 = vadd.xlane.f32.xlu0 %v60
    %v62 = vpop.xlane.xlu0 %61
    %v63 = vsel %vm47, %v59, 0.0
    %64 = vadd.xlane.f32.xlu0 %v63
    %v65 = vpop.xlane.xlu0 %64
    %v66 = vmul.f32 %v62, 0.032258064
    %v67 = vmul.f32 %v65, 0.032258064
    %v68 = vrsqrt.pop %v66
    %v69 = vmul.f32 %v68, %v66
    %v70 = vmul.f32 %v69, %v68
    %v71 = vmul.f32 0.5, %v70
    %v72 = vsub.f32 1.5, %v71
    %v73 = vmul.f32 %v68, %v72
    %v74 = vmul.f32 %v66, %v73
    %vm75 = vcmp.eq.f32.partialorder %v66, inf
    %v76 = vsel %vm75, %v66, %v74
    %vm77 = vcmp.eq.f32.partialorder %v66, 0.0
    %v78 = vand.u32 %v66, 2147483648
    %v79 = vsel %vm77, %v78, %v76
    %v80 = vrsqrt.pop %v67
    %v81 = vmul.f32 %v80, %v67
    %v82 = vmul.f32 %v81, %v80
    %v83 = vmul.f32 0.5, %v82
    %v84 = vsub.f32 1.5, %v83
    %v85 = vmul.f32 %v80, %v84
    %v86 = vmul.f32 %v67, %v85
    %vm87 = vcmp.eq.f32.partialorder %v67, inf
    %v88 = vsel %vm87, %v67, %v86
    %vm89 = vcmp.eq.f32.partialorder %v67, 0.0
    %v90 = vand.u32 %v67, 2147483648
    %v91 = vsel %vm89, %v90, %v88
    %v92 = vadd.f32 %v79, 1e-06
    %v93 = vadd.f32 %v91, 1e-06
    %v94 = vrcp.pop %v92
    %v95 = vrcp.pop %v93
    %v96 = vmul.f32 %v92, %v94
    %v97 = vmul.f32 %v93, %v95
    %v98 = vsub.f32 2.0, %v96
    %v99 = vsub.f32 2.0, %v97
    %v100 = vmul.f32 %v94, %v98
    %v101 = vmul.f32 %v95, %v99
    %v102 = vld [vmem:[#allocation5] sm:$0x1]
    %v103 = vmul.f32 %v56, %v100
    %v104 = vmul.f32 %v57, %v101
    %v106 = vperm.slane %v102, 0
    %v108 = vmul.f32 %v106, %v103
    %v109 = vmul.f32 %v106, %v104
    %v110 = vld [vmem:[%s2] sm:$0x1]
    %v112 = vperm.slane %v110, 0
    %v114 = vadd.f32 %v108, %v112
    %v115 = vadd.f32 %v109, %v112
    %116 = vst.msk [vmem:[#allocation7] sm:$0xff] %vm47, %v114
    %117 = vst.msk [vmem:[#allocation7 + $0x8] sm:$0xff] %vm47, %v115
    // Predicated region
    $region22: #{tpu_custom_call.1} parent=1 // pred_check
      _
    $region23: #{tpu_custom_call.1} parent=1 // pred_check_branch
      %119 = sbr.rel (0) target = $region25
    $region24: #{tpu_custom_call.1} parent=1 // pred_region
      %121 = vsyncadd [#allocation4], 0
      %s122 = sshll.u32 [#allocation7], 4
      %s123 = int_to_ptr.vmem [resolvable:$true] %s122
      %s124 = sshll.u32 %s3, 4
      %s125 = int_to_ptr.hbm [resolvable:$true] %s124
      %130 = dma.vmem_to_hbm [thread:$0]  %s123, 256, %s125, [#allocation4], 128, 128, 8
    $region25: #{tpu_custom_call.1} parent=1 // pred_fallthru
      _
    // Predicated region
    $region26: #{tpu_custom_call.1} parent=1 // pred_check
      _
    $region27: #{tpu_custom_call.1} parent=1 // pred_check_branch
      %132 = sbr.rel (0) target = $region29
    $region28: #{tpu_custom_call.1} parent=1 // pred_region
      %134 = dma.done [#allocation4], 256
    $region29: #{tpu_custom_call.1} parent=1 // pred_fallthru
      _
    %135 = vsyncpa [#allocation3], 1
    %136 = vsyncpa [#allocation6], 1
    %137 = vsyncpa [#allocation4], 1

</llo_original>
